<compile_context>
chip_gen: v7x
topology: tpu7x:2x2x1
jax: 0.10.0
libtpu: 0.0.40
codegen_flags: <defaults>
</compile_context>

<pallas_src>
import functools

import jax
import jax.numpy as jnp
from jax.experimental import pallas as pl
from jax.experimental.pallas import tpu as pltpu


# ---------------------------------------------------------------------------
# In-kernel helpers
# ---------------------------------------------------------------------------
def _shift_segments(x, d, mask_fn):
    """result[:, t] = x[:, t+d] if the source stays inside t's batch segment, else 0.

    `mask_fn(d)` returns a cached (1, N) boolean validity mask (also kills any
    contribution that would cross batch seams or the circular wrap of the roll).
    """
    if d == 0:
        return x
    n = x.shape[-1]
    s = (-d) % n
    if n % 128 == 0:
        rolled = pltpu.roll(x, s, axis=1)     # XLU lane rotate (off the VALU slot)
    else:
        rolled = jnp.roll(x, s, axis=1)       # static slice+concat fallback (tiny tiles)
    return jnp.where(mask_fn(d), rolled, 0.0)


def _poly_conv_relu(e, o, w_flat, b, *, K, mask_fn, cd):
    """'same' Conv1d (stride 1, odd K) + ReLU on an (even, odd) polyphase pair.

    e, o: (Cin, N) phase signals.  w_flat: (Cout, K*Cin), tap-k block in columns
    [k*Cin, (k+1)*Cin).  b: (Cout, 1).  Returns the output phase pair.
    """
    P = (K - 1) // 2
    cache = {}

    def sh(x, tag, d):                         # dedup shifted tensors across taps
        key = (tag, d)
        if key not in cache:
            cache[key] = _shift_segments(x, d, mask_fn)
        return cache[key]

    pieces_e, pieces_o = [], []
    for k in range(K):
        ofs = k - P
        if ofs % 2 == 0:                       # even offset 2d
            d = ofs // 2
            pieces_e.append(sh(e, "e", d))
            pieces_o.append(sh(o, "o", d))
        else:                                  # odd offset 2d+1
            d = (ofs - 1) // 2
            pieces_e.append(sh(o, "o", d))
            pieces_o.append(sh(e, "e", d + 1))

    slab_e = jnp.concatenate(pieces_e, axis=0)     # (K*Cin, N) im2col slab
    slab_o = jnp.concatenate(pieces_o, axis=0)
    w = w_flat.astype(cd)
    oe = jnp.dot(w, slab_e.astype(cd), preferred_element_type=jnp.float32) + b
    oo = jnp.dot(w, slab_o.astype(cd), preferred_element_type=jnp.float32) + b
    return jnp.maximum(oe, 0.0), jnp.maximum(oo, 0.0)


def conv_up_kernel(pos_ref, x1_ref, x2e_ref, x2o_ref,
                   upw_ref, upb_ref,
                   w1_ref, b1_ref, w2_ref, b2_ref, w3_ref, b3_ref,
                   oe_ref, oo_ref, *, seg_len, out_ch, cd):
    pos = pos_ref[...]                                   # (1, N) int32, t mod L1
    x1 = x1_ref[...]                                     # (in_ch, N)

    # Segment-boundary masks, computed once and shared by all conv layers.
    mask_cache = {}

    def mask_fn(d):
        if d not in mask_cache:
            mask_cache[d] = jnp.logical_and(pos + d >= 0, pos + d < seg_len)
        return mask_cache[d]

    # ConvTranspose1d(in_ch, out_ch, kernel=2, stride=2): the two taps are fused
    # into one (2*out_ch, in_ch) matrix; rows [0:out_ch] are the even output
    # phase, rows [out_ch:2*out_ch] the odd one.  One MXU dot, no interleave.
    y = jnp.dot(upw_ref[...].astype(cd), x1.astype(cd),
                preferred_element_type=jnp.float32)      # (2*out_ch, N)
    upb = upb_ref[...]
    up_e = y[:out_ch, :] + upb
    up_o = y[out_ch:, :] + upb

    # torch.cat((up, skip), dim=1) == sublane concat of the phase tiles.
    he = jnp.concatenate([up_e, x2e_ref[...]], axis=0)   # (in_ch, N)
    ho = jnp.concatenate([up_o, x2o_ref[...]], axis=0)

    # Double_conv: (conv k=3 -> ReLU) -> (k=5 -> ReLU) -> (k=7 -> ReLU)
    he, ho = _poly_conv_relu(he, ho, w1_ref[...], b1_ref[...], K=3,
                             mask_fn=mask_fn, cd=cd)
    he, ho = _poly_conv_relu(he, ho, w2_ref[...], b2_ref[...], K=5,
                             mask_fn=mask_fn, cd=cd)
    he, ho = _poly_conv_relu(he, ho, w3_ref[...], b3_ref[...], K=7,
                             mask_fn=mask_fn, cd=cd)
    # Dropout(p) is identity in eval mode.
    # TODO(synk): training-mode stochastic dropout not implemented.

    oe_ref[...] = he.astype(oe_ref.dtype)
    oo_ref[...] = ho.astype(oo_ref.dtype)


# ---------------------------------------------------------------------------
# Wrapper
# ---------------------------------------------------------------------------
def _pick_block_batch(B, L1):
    """Batch elements per grid step.  Lane width must be a multiple of 128 (or the
    full B*L1 extent).  Take the LARGEST aligned chunk under an 8192-lane cap so the
    per-step VMEM live set stays a few MiB (fits default scoped VMEM on v5e/v6e/v7x)
    while per-step pipeline overhead is amortized."""
    aligned = [d for d in range(1, B + 1) if B % d == 0 and (d * L1) % 128 == 0]
    within = [d for d in aligned if d * L1 <= 8192]
    if within:
        return within[-1]          # largest aligned chunk under the cap
    if aligned:
        return aligned[0]          # everything aligned is over the cap: take smallest
    return B                       # single block spanning the full lane extent (always legal)


def conv_up_forward(x1, x2, params, *, compute_dtype=jnp.float32):
    B, in_ch, L1 = x1.shape
    out_ch = params["up_b"].shape[0]
    skip_ch = in_ch - out_ch
    L_up = 2 * L1
    assert x2.shape[1] == skip_ch, "skip-connection channel count mismatch"
    dim1 = x2.shape[2]
    assert dim1 >= L_up, "skip connection shorter than upsampled length"
    start = (dim1 - L_up) // 2
    x2c = x2[:, :, start:start + L_up]                       # extract_img (crop)

    # ---- wrapper-side layout plumbing (pure XLA, no compute hoisted) ----
    # Fold batch into the lane axis: (B, C, L) -> (C, B*L).
    x1t = jnp.transpose(x1, (1, 0, 2)).reshape(in_ch, B * L1)
    # Skip connection split into even/odd phases of the upsampled grid.
    x2e = jnp.transpose(x2c[:, :, 0::2], (1, 0, 2)).reshape(skip_ch, B * L1)
    x2o = jnp.transpose(x2c[:, :, 1::2], (1, 0, 2)).reshape(skip_ch, B * L1)
    # Per-lane position inside its batch segment (for conv boundary masks).
    pos = (jnp.arange(B * L1, dtype=jnp.int32) % L1).reshape(1, B * L1)

    # ---- weight prep ----
    up_w = params["up_w"]                                    # (in_ch, out_ch, 2)
    upw = jnp.concatenate([up_w[:, :, 0].T, up_w[:, :, 1].T], axis=0)  # (2*out_ch, in_ch)
    upb = params["up_b"].reshape(out_ch, 1)

    def flat_w(w):    # (Cout, Cin, K) -> (Cout, K*Cin), tap-major column blocks
        cout, cin, K = w.shape
        return jnp.transpose(w, (0, 2, 1)).reshape(cout, K * cin)

    w1f, b1 = flat_w(params["w1"]), params["b1"].reshape(out_ch, 1)
    w2f, b2 = flat_w(params["w2"]), params["b2"].reshape(out_ch, 1)
    w3f, b3 = flat_w(params["w3"]), params["b3"].reshape(out_ch, 1)

    Bblk = _pick_block_batch(B, L1)
    Nb = Bblk * L1
    grid = (B // Bblk,)

    def tile(c):
        return pl.BlockSpec((c, Nb), lambda i: (0, i))

    def full(a):
        n = a.ndim
        return pl.BlockSpec(a.shape, lambda i, _n=n: (0,) * _n)

    kernel = functools.partial(conv_up_kernel, seg_len=L1, out_ch=out_ch,
                               cd=compute_dtype)

    grid_spec = pltpu.PrefetchScalarGridSpec(
        num_scalar_prefetch=0,
        grid=grid,
        in_specs=[tile(1), tile(in_ch), tile(skip_ch), tile(skip_ch),
                  full(upw), full(upb),
                  full(w1f), full(b1), full(w2f), full(b2), full(w3f), full(b3)],
        out_specs=(tile(out_ch), tile(out_ch)),
    )

    oe, oo = pl.pallas_call(
        kernel,
        out_shape=(jax.ShapeDtypeStruct((out_ch, B * L1), jnp.float32),
                   jax.ShapeDtypeStruct((out_ch, B * L1), jnp.float32)),
        grid_spec=grid_spec,
        compiler_params=pltpu.CompilerParams(dimension_semantics=("parallel",)),
    )(pos, x1t, x2e, x2o, upw, upb, w1f, b1, w2f, b2, w3f, b3)

    # Re-interleave phases and restore (B, out_ch, L_up) — XLA layout plumbing.
    oe = oe.reshape(out_ch, B, L1)
    oo = oo.reshape(out_ch, B, L1)
    out = jnp.stack([oe, oo], axis=-1).reshape(out_ch, B, L_up)
    return jnp.transpose(out, (1, 0, 2))


# ---------------------------------------------------------------------------
# Pure-JAX reference (identical PyTorch semantics, eval mode)
# ---------------------------------------------------------------------------
def conv_up_reference(x1, x2, params):
    B, in_ch, L1 = x1.shape
    out_ch = params["up_b"].shape[0]
    L_up = 2 * L1
    up_w = params["up_w"]                                    # (in_ch, out_ch, 2)
    yk = jnp.einsum("bil,iok->bokl", x1, up_w)               # (B, out_ch, 2, L1)
    y = jnp.transpose(yk, (0, 1, 3, 2)).reshape(B, out_ch, L_up)
    y = y + params["up_b"][None, :, None]

    dim1 = x2.shape[2]
    start = int((dim1 - L_up) / 2)
    x2c = x2[:, :, start:start + L_up]
    h = jnp.concatenate([y, x2c], axis=1)

    def conv(h, w, b, pad):
        hp = jnp.pad(h, ((0, 0), (0, 0), (pad, pad)))
        K = w.shape[2]
        out = sum(jnp.einsum("bil,oi->bol", hp[:, :, k:k + L_up], w[:, :, k])
                  for k in range(K))
        return out + b[None, :, None]

    h = jax.nn.relu(conv(h, params["w1"], params["b1"], 1))
    h = jax.nn.relu(conv(h, params["w2"], params["b2"], 2))
    h = jax.nn.relu(conv(h, params["w3"], params["b3"], 3))
    return h


# ---------------------------------------------------------------------------
if __name__ == "__main__":
    def run_case(key, B, in_ch, out_ch, L1, L2):
        skip_ch = in_ch - out_ch
        ks = jax.random.split(key, 10)

        def u(k, shape, fan_in):
            bound = 1.0 / float(jnp.sqrt(fan_in))
            return jax.random.uniform(k, shape, jnp.float32, -bound, bound)

        params = {
            "up_w": u(ks[0], (in_ch, out_ch, 2), in_ch * 2),
            "up_b": u(ks[1], (out_ch,), in_ch * 2),
            "w1": u(ks[2], (out_ch, in_ch, 3), in_ch * 3),
            "b1": u(ks[3], (out_ch,), in_ch * 3),
            "w2": u(ks[4], (out_ch, out_ch, 5), out_ch * 5),
            "b2": u(ks[5], (out_ch,), out_ch * 5),
            "w3": u(ks[6], (out_ch, out_ch, 7), out_ch * 7),
            "b3": u(ks[7], (out_ch,), out_ch * 7),
        }
        x1 = jax.random.normal(ks[8], (B, in_ch, L1), jnp.float32)
        x2 = jax.random.normal(ks[9], (B, skip_ch, L2), jnp.float32)

        out = jax.block_until_ready(conv_up_forward(x1, x2, params))
        ref = conv_up_reference(x1, x2, params)
        assert out.shape == (B, out_ch, 2 * L1), out.shape
        err = float(jnp.max(jnp.abs(out - ref)))
        assert bool(jnp.allclose(out, ref, atol=2e-4, rtol=2e-4)), err

    key = jax.random.PRNGKey(0)
    k1, k2, k3 = jax.random.split(key, 3)
    run_case(k1, B=2, in_ch=8, out_ch=4, L1=8, L2=20)     # original small case (unaligned path)
    run_case(k2, B=3, in_ch=8, out_ch=4, L1=24, L2=54)    # multi-segment batch seams
    run_case(k3, B=4, in_ch=8, out_ch=4, L1=128, L2=272)  # 128-aligned lanes (pltpu.roll path)
    print("KERNEL_OK")
</pallas_src>

<mosaic_0001>
module attributes {stable_mosaic.version = 11 : i64} {
  func.func @conv_up_kernel(%arg0: i32, %arg1: memref<1x16xi32, #tpu.memory_space<vmem>>, %arg2: memref<8x16xf32, #tpu.memory_space<vmem>>, %arg3: memref<4x16xf32, #tpu.memory_space<vmem>>, %arg4: memref<4x16xf32, #tpu.memory_space<vmem>>, %arg5: memref<8x8xf32, #tpu.memory_space<vmem>>, %arg6: memref<4x1xf32, #tpu.memory_space<vmem>>, %arg7: memref<4x24xf32, #tpu.memory_space<vmem>>, %arg8: memref<4x1xf32, #tpu.memory_space<vmem>>, %arg9: memref<4x20xf32, #tpu.memory_space<vmem>>, %arg10: memref<4x1xf32, #tpu.memory_space<vmem>>, %arg11: memref<4x28xf32, #tpu.memory_space<vmem>>, %arg12: memref<4x1xf32, #tpu.memory_space<vmem>>, %arg13: memref<4x16xf32, #tpu.memory_space<vmem>>, %arg14: memref<4x16xf32, #tpu.memory_space<vmem>>) attributes {dimension_semantics = [#tpu.dimension_semantics<parallel>], iteration_bounds = array<i64: 1>, scalar_prefetch = 0 : i64, scratch_operands = 0 : i64, tpu.core_type = #tpu.core_type<tc>, window_params = [{transform_indices = @transform_0, window_bounds = array<i64: 1, 16>}, {transform_indices = @transform_1, window_bounds = array<i64: 8, 16>}, {transform_indices = @transform_2, window_bounds = array<i64: 4, 16>}, {transform_indices = @transform_3, window_bounds = array<i64: 4, 16>}, {pipeline_mode = #tpu.pipeline_mode<synchronous>, transform_indices = @transform_4, window_bounds = array<i64: 8, 8>}, {pipeline_mode = #tpu.pipeline_mode<synchronous>, transform_indices = @transform_5, window_bounds = array<i64: 4, 1>}, {pipeline_mode = #tpu.pipeline_mode<synchronous>, transform_indices = @transform_6, window_bounds = array<i64: 4, 24>}, {pipeline_mode = #tpu.pipeline_mode<synchronous>, transform_indices = @transform_7, window_bounds = array<i64: 4, 1>}, {pipeline_mode = #tpu.pipeline_mode<synchronous>, transform_indices = @transform_8, window_bounds = array<i64: 4, 20>}, {pipeline_mode = #tpu.pipeline_mode<synchronous>, transform_indices = @transform_9, window_bounds = array<i64: 4, 1>}, {pipeline_mode = #tpu.pipeline_mode<synchronous>, transform_indices = @transform_10, window_bounds = array<i64: 4, 28>}, {pipeline_mode = #tpu.pipeline_mode<synchronous>, transform_indices = @transform_11, window_bounds = array<i64: 4, 1>}, {transform_indices = @transform_12, window_bounds = array<i64: 4, 16>}, {transform_indices = @transform_13, window_bounds = array<i64: 4, 16>}]} {
    %c0 = arith.constant 0 : index
    %c0_0 = arith.constant 0 : index
    %0 = vector.load %arg1[%c0, %c0_0] : memref<1x16xi32, #tpu.memory_space<vmem>>, vector<1x16xi32>
    %c0_1 = arith.constant 0 : index
    %c0_2 = arith.constant 0 : index
    %1 = vector.load %arg2[%c0_1, %c0_2] : memref<8x16xf32, #tpu.memory_space<vmem>>, vector<8x16xf32>
    %c0_3 = arith.constant 0 : index
    %c0_4 = arith.constant 0 : index
    %2 = vector.load %arg5[%c0_3, %c0_4] : memref<8x8xf32, #tpu.memory_space<vmem>>, vector<8x8xf32>
    %cst = arith.constant dense<0.000000e+00> : vector<8x16xf32>
    %3 = tpu.matmul %2, %1, %cst {dimension_numbers = #tpu.dot_dimension_numbers<[1], [0], [0], [1], [0, 0, 1, 1], [], []>} : vector<8x8xf32>, vector<8x16xf32>, vector<8x16xf32> -> vector<8x16xf32>
    %c0_5 = arith.constant 0 : index
    %c0_6 = arith.constant 0 : index
    %4 = vector.load %arg6[%c0_5, %c0_6] : memref<4x1xf32, #tpu.memory_space<vmem>>, vector<4x1xf32>
    %5 = vector.extract_strided_slice %3 {offsets = [0, 0], sizes = [4, 16], strides = [1, 1]} : vector<8x16xf32> to vector<4x16xf32>
    %6 = vector.broadcast %4 : vector<4x1xf32> to vector<4x16xf32>
    %7 = arith.addf %5, %6 : vector<4x16xf32>
    %8 = vector.extract_strided_slice %3 {offsets = [4, 0], sizes = [4, 16], strides = [1, 1]} : vector<8x16xf32> to vector<4x16xf32>
    %9 = vector.broadcast %4 : vector<4x1xf32> to vector<4x16xf32>
    %10 = arith.addf %8, %9 : vector<4x16xf32>
    %c0_7 = arith.constant 0 : index
    %c0_8 = arith.constant 0 : index
    %11 = vector.load %arg3[%c0_7, %c0_8] : memref<4x16xf32, #tpu.memory_space<vmem>>, vector<4x16xf32>
    %12 = tpu.concatenate %7, %11 in 0 : vector<4x16xf32>, vector<4x16xf32> -> vector<8x16xf32>
    %c0_9 = arith.constant 0 : index
    %c0_10 = arith.constant 0 : index
    %13 = vector.load %arg4[%c0_9, %c0_10] : memref<4x16xf32, #tpu.memory_space<vmem>>, vector<4x16xf32>
    %14 = tpu.concatenate %10, %13 in 0 : vector<4x16xf32>, vector<4x16xf32> -> vector<8x16xf32>
    %c0_11 = arith.constant 0 : index
    %c0_12 = arith.constant 0 : index
    %15 = vector.load %arg7[%c0_11, %c0_12] : memref<4x24xf32, #tpu.memory_space<vmem>>, vector<4x24xf32>
    %c0_13 = arith.constant 0 : index
    %c0_14 = arith.constant 0 : index
    %16 = vector.load %arg8[%c0_13, %c0_14] : memref<4x1xf32, #tpu.memory_space<vmem>>, vector<4x1xf32>
    %17 = vector.extract_strided_slice %14 {offsets = [0, 15], sizes = [8, 1], strides = [1, 1]} : vector<8x16xf32> to vector<8x1xf32>
    %18 = vector.extract_strided_slice %14 {offsets = [0, 0], sizes = [8, 15], strides = [1, 1]} : vector<8x16xf32> to vector<8x15xf32>
    %19 = tpu.concatenate %17, %18 in 1 : vector<8x1xf32>, vector<8x15xf32> -> vector<8x16xf32>
    %c-1_i32 = arith.constant -1 : i32
    %20 = vector.broadcast %c-1_i32 : i32 to vector<1x16xi32>
    %21 = arith.addi %0, %20 : vector<1x16xi32>
    %c0_i32 = arith.constant 0 : i32
    %22 = vector.broadcast %c0_i32 : i32 to vector<1x16xi32>
    %23 = arith.cmpi sge, %21, %22 : vector<1x16xi32>
    %c-1_i32_15 = arith.constant -1 : i32
    %24 = vector.broadcast %c-1_i32_15 : i32 to vector<1x16xi32>
    %25 = arith.addi %0, %24 : vector<1x16xi32>
    %c8_i32 = arith.constant 8 : i32
    %26 = vector.broadcast %c8_i32 : i32 to vector<1x16xi32>
    %27 = arith.cmpi slt, %25, %26 : vector<1x16xi32>
    %28 = arith.andi %23, %27 : vector<1x16xi1>
    %cst_16 = arith.constant 0.000000e+00 : f32
    %29 = vector.shape_cast %28 : vector<1x16xi1> to vector<1x16xi1>
    %30 = vector.broadcast %29 : vector<1x16xi1> to vector<8x16xi1>
    %31 = vector.broadcast %cst_16 : f32 to vector<8x16xf32>
    %32 = arith.select %30, %19, %31 : vector<8x16xi1>, vector<8x16xf32>
    %33 = vector.extract_strided_slice %12 {offsets = [0, 1], sizes = [8, 15], strides = [1, 1]} : vector<8x16xf32> to vector<8x15xf32>
    %34 = vector.extract_strided_slice %12 {offsets = [0, 0], sizes = [8, 1], strides = [1, 1]} : vector<8x16xf32> to vector<8x1xf32>
    %35 = tpu.concatenate %33, %34 in 1 : vector<8x15xf32>, vector<8x1xf32> -> vector<8x16xf32>
    %c1_i32 = arith.constant 1 : i32
    %36 = vector.broadcast %c1_i32 : i32 to vector<1x16xi32>
    %37 = arith.addi %0, %36 : vector<1x16xi32>
    %c0_i32_17 = arith.constant 0 : i32
    %38 = vector.broadcast %c0_i32_17 : i32 to vector<1x16xi32>
    %39 = arith.cmpi sge, %37, %38 : vector<1x16xi32>
    %c1_i32_18 = arith.constant 1 : i32
    %40 = vector.broadcast %c1_i32_18 : i32 to vector<1x16xi32>
    %41 = arith.addi %0, %40 : vector<1x16xi32>
    %c8_i32_19 = arith.constant 8 : i32
    %42 = vector.broadcast %c8_i32_19 : i32 to vector<1x16xi32>
    %43 = arith.cmpi slt, %41, %42 : vector<1x16xi32>
    %44 = arith.andi %39, %43 : vector<1x16xi1>
    %cst_20 = arith.constant 0.000000e+00 : f32
    %45 = vector.shape_cast %44 : vector<1x16xi1> to vector<1x16xi1>
    %46 = vector.broadcast %45 : vector<1x16xi1> to vector<8x16xi1>
    %47 = vector.broadcast %cst_20 : f32 to vector<8x16xf32>
    %48 = arith.select %46, %35, %47 : vector<8x16xi1>, vector<8x16xf32>
    %49 = tpu.concatenate %32, %12, %14 in 0 : vector<8x16xf32>, vector<8x16xf32>, vector<8x16xf32> -> vector<24x16xf32>
    %50 = tpu.concatenate %12, %14, %48 in 0 : vector<8x16xf32>, vector<8x16xf32>, vector<8x16xf32> -> vector<24x16xf32>
    %cst_21 = arith.constant dense<0.000000e+00> : vector<4x16xf32>
    %51 = tpu.matmul %15, %49, %cst_21 {dimension_numbers = #tpu.dot_dimension_numbers<[1], [0], [0], [1], [0, 0, 1, 1], [], []>} : vector<4x24xf32>, vector<24x16xf32>, vector<4x16xf32> -> vector<4x16xf32>
    %52 = vector.broadcast %16 : vector<4x1xf32> to vector<4x16xf32>
    %53 = arith.addf %51, %52 : vector<4x16xf32>
    %cst_22 = arith.constant dense<0.000000e+00> : vector<4x16xf32>
    %54 = tpu.matmul %15, %50, %cst_22 {dimension_numbers = #tpu.dot_dimension_numbers<[1], [0], [0], [1], [0, 0, 1, 1], [], []>} : vector<4x24xf32>, vector<24x16xf32>, vector<4x16xf32> -> vector<4x16xf32>
    %55 = vector.broadcast %16 : vector<4x1xf32> to vector<4x16xf32>
    %56 = arith.addf %54, %55 : vector<4x16xf32>
    %cst_23 = arith.constant 0.000000e+00 : f32
    %57 = vector.broadcast %cst_23 : f32 to vector<4x16xf32>
    %58 = arith.maximumf %53, %57 : vector<4x16xf32>
    %cst_24 = arith.constant 0.000000e+00 : f32
    %59 = vector.broadcast %cst_24 : f32 to vector<4x16xf32>
    %60 = arith.maximumf %56, %59 : vector<4x16xf32>
    %c0_25 = arith.constant 0 : index
    %c0_26 = arith.constant 0 : index
    %61 = vector.load %arg9[%c0_25, %c0_26] : memref<4x20xf32, #tpu.memory_space<vmem>>, vector<4x20xf32>
    %c0_27 = arith.constant 0 : index
    %c0_28 = arith.constant 0 : index
    %62 = vector.load %arg10[%c0_27, %c0_28] : memref<4x1xf32, #tpu.memory_space<vmem>>, vector<4x1xf32>
    %63 = vector.extract_strided_slice %58 {offsets = [0, 15], sizes = [4, 1], strides = [1, 1]} : vector<4x16xf32> to vector<4x1xf32>
    %64 = vector.extract_strided_slice %58 {offsets = [0, 0], sizes = [4, 15], strides = [1, 1]} : vector<4x16xf32> to vector<4x15xf32>
    %65 = tpu.concatenate %63, %64 in 1 : vector<4x1xf32>, vector<4x15xf32> -> vector<4x16xf32>
    %cst_29 = arith.constant 0.000000e+00 : f32
    %66 = vector.shape_cast %28 : vector<1x16xi1> to vector<1x16xi1>
    %67 = vector.broadcast %66 : vector<1x16xi1> to vector<4x16xi1>
    %68 = vector.broadcast %cst_29 : f32 to vector<4x16xf32>
    %69 = arith.select %67, %65, %68 : vector<4x16xi1>, vector<4x16xf32>
    %70 = vector.extract_strided_slice %60 {offsets = [0, 15], sizes = [4, 1], strides = [1, 1]} : vector<4x16xf32> to vector<4x1xf32>
    %71 = vector.extract_strided_slice %60 {offsets = [0, 0], sizes = [4, 15], strides = [1, 1]} : vector<4x16xf32> to vector<4x15xf32>
    %72 = tpu.concatenate %70, %71 in 1 : vector<4x1xf32>, vector<4x15xf32> -> vector<4x16xf32>
    %cst_30 = arith.constant 0.000000e+00 : f32
    %73 = vector.shape_cast %28 : vector<1x16xi1> to vector<1x16xi1>
    %74 = vector.broadcast %73 : vector<1x16xi1> to vector<4x16xi1>
    %75 = vector.broadcast %cst_30 : f32 to vector<4x16xf32>
    %76 = arith.select %74, %72, %75 : vector<4x16xi1>, vector<4x16xf32>
    %77 = vector.extract_strided_slice %58 {offsets = [0, 1], sizes = [4, 15], strides = [1, 1]} : vector<4x16xf32> to vector<4x15xf32>
    %78 = vector.extract_strided_slice %58 {offsets = [0, 0], sizes = [4, 1], strides = [1, 1]} : vector<4x16xf32> to vector<4x1xf32>
    %79 = tpu.concatenate %77, %78 in 1 : vector<4x15xf32>, vector<4x1xf32> -> vector<4x16xf32>
    %cst_31 = arith.constant 0.000000e+00 : f32
    %80 = vector.shape_cast %44 : vector<1x16xi1> to vector<1x16xi1>
    %81 = vector.broadcast %80 : vector<1x16xi1> to vector<4x16xi1>
    %82 = vector.broadcast %cst_31 : f32 to vector<4x16xf32>
    %83 = arith.select %81, %79, %82 : vector<4x16xi1>, vector<4x16xf32>
    %84 = vector.extract_strided_slice %60 {offsets = [0, 1], sizes = [4, 15], strides = [1, 1]} : vector<4x16xf32> to vector<4x15xf32>
    %85 = vector.extract_strided_slice %60 {offsets = [0, 0], sizes = [4, 1], strides = [1, 1]} : vector<4x16xf32> to vector<4x1xf32>
    %86 = tpu.concatenate %84, %85 in 1 : vector<4x15xf32>, vector<4x1xf32> -> vector<4x16xf32>
    %cst_32 = arith.constant 0.000000e+00 : f32
    %87 = vector.shape_cast %44 : vector<1x16xi1> to vector<1x16xi1>
    %88 = vector.broadcast %87 : vector<1x16xi1> to vector<4x16xi1>
    %89 = vector.broadcast %cst_32 : f32 to vector<4x16xf32>
    %90 = arith.select %88, %86, %89 : vector<4x16xi1>, vector<4x16xf32>
    %91 = tpu.concatenate %69, %76, %58, %60, %83 in 0 : vector<4x16xf32>, vector<4x16xf32>, vector<4x16xf32>, vector<4x16xf32>, vector<4x16xf32> -> vector<20x16xf32>
    %92 = tpu.concatenate %76, %58, %60, %83, %90 in 0 : vector<4x16xf32>, vector<4x16xf32>, vector<4x16xf32>, vector<4x16xf32>, vector<4x16xf32> -> vector<20x16xf32>
    %cst_33 = arith.constant dense<0.000000e+00> : vector<4x16xf32>
    %93 = tpu.matmul %61, %91, %cst_33 {dimension_numbers = #tpu.dot_dimension_numbers<[1], [0], [0], [1], [0, 0, 1, 1], [], []>} : vector<4x20xf32>, vector<20x16xf32>, vector<4x16xf32> -> vector<4x16xf32>
    %94 = vector.broadcast %62 : vector<4x1xf32> to vector<4x16xf32>
    %95 = arith.addf %93, %94 : vector<4x16xf32>
    %cst_34 = arith.constant dense<0.000000e+00> : vector<4x16xf32>
    %96 = tpu.matmul %61, %92, %cst_34 {dimension_numbers = #tpu.dot_dimension_numbers<[1], [0], [0], [1], [0, 0, 1, 1], [], []>} : vector<4x20xf32>, vector<20x16xf32>, vector<4x16xf32> -> vector<4x16xf32>
    %97 = vector.broadcast %62 : vector<4x1xf32> to vector<4x16xf32>
    %98 = arith.addf %96, %97 : vector<4x16xf32>
    %cst_35 = arith.constant 0.000000e+00 : f32
    %99 = vector.broadcast %cst_35 : f32 to vector<4x16xf32>
    %100 = arith.maximumf %95, %99 : vector<4x16xf32>
    %cst_36 = arith.constant 0.000000e+00 : f32
    %101 = vector.broadcast %cst_36 : f32 to vector<4x16xf32>
    %102 = arith.maximumf %98, %101 : vector<4x16xf32>
    %c0_37 = arith.constant 0 : index
    %c0_38 = arith.constant 0 : index
    %103 = vector.load %arg11[%c0_37, %c0_38] : memref<4x28xf32, #tpu.memory_space<vmem>>, vector<4x28xf32>
    %c0_39 = arith.constant 0 : index
    %c0_40 = arith.constant 0 : index
    %104 = vector.load %arg12[%c0_39, %c0_40] : memref<4x1xf32, #tpu.memory_space<vmem>>, vector<4x1xf32>
    %105 = vector.extract_strided_slice %102 {offsets = [0, 14], sizes = [4, 2], strides = [1, 1]} : vector<4x16xf32> to vector<4x2xf32>
    %106 = vector.extract_strided_slice %102 {offsets = [0, 0], sizes = [4, 14], strides = [1, 1]} : vector<4x16xf32> to vector<4x14xf32>
    %107 = tpu.concatenate %105, %106 in 1 : vector<4x2xf32>, vector<4x14xf32> -> vector<4x16xf32>
    %c-2_i32 = arith.constant -2 : i32
    %108 = vector.broadcast %c-2_i32 : i32 to vector<1x16xi32>
    %109 = arith.addi %0, %108 : vector<1x16xi32>
    %c0_i32_41 = arith.constant 0 : i32
    %110 = vector.broadcast %c0_i32_41 : i32 to vector<1x16xi32>
    %111 = arith.cmpi sge, %109, %110 : vector<1x16xi32>
    %c-2_i32_42 = arith.constant -2 : i32
    %112 = vector.broadcast %c-2_i32_42 : i32 to vector<1x16xi32>
    %113 = arith.addi %0, %112 : vector<1x16xi32>
    %c8_i32_43 = arith.constant 8 : i32
    %114 = vector.broadcast %c8_i32_43 : i32 to vector<1x16xi32>
    %115 = arith.cmpi slt, %113, %114 : vector<1x16xi32>
    %116 = arith.andi %111, %115 : vector<1x16xi1>
    %cst_44 = arith.constant 0.000000e+00 : f32
    %117 = vector.shape_cast %116 : vector<1x16xi1> to vector<1x16xi1>
    %118 = vector.broadcast %117 : vector<1x16xi1> to vector<4x16xi1>
    %119 = vector.broadcast %cst_44 : f32 to vector<4x16xf32>
    %120 = arith.select %118, %107, %119 : vector<4x16xi1>, vector<4x16xf32>
    %121 = vector.extract_strided_slice %100 {offsets = [0, 15], sizes = [4, 1], strides = [1, 1]} : vector<4x16xf32> to vector<4x1xf32>
    %122 = vector.extract_strided_slice %100 {offsets = [0, 0], sizes = [4, 15], strides = [1, 1]} : vector<4x16xf32> to vector<4x15xf32>
    %123 = tpu.concatenate %121, %122 in 1 : vector<4x1xf32>, vector<4x15xf32> -> vector<4x16xf32>
    %cst_45 = arith.constant 0.000000e+00 : f32
    %124 = vector.shape_cast %28 : vector<1x16xi1> to vector<1x16xi1>
    %125 = vector.broadcast %124 : vector<1x16xi1> to vector<4x16xi1>
    %126 = vector.broadcast %cst_45 : f32 to vector<4x16xf32>
    %127 = arith.select %125, %123, %126 : vector<4x16xi1>, vector<4x16xf32>
    %128 = vector.extract_strided_slice %102 {offsets = [0, 15], sizes = [4, 1], strides = [1, 1]} : vector<4x16xf32> to vector<4x1xf32>
    %129 = vector.extract_strided_slice %102 {offsets = [0, 0], sizes = [4, 15], strides = [1, 1]} : vector<4x16xf32> to vector<4x15xf32>
    %130 = tpu.concatenate %128, %129 in 1 : vector<4x1xf32>, vector<4x15xf32> -> vector<4x16xf32>
    %cst_46 = arith.constant 0.000000e+00 : f32
    %131 = vector.shape_cast %28 : vector<1x16xi1> to vector<1x16xi1>
    %132 = vector.broadcast %131 : vector<1x16xi1> to vector<4x16xi1>
    %133 = vector.broadcast %cst_46 : f32 to vector<4x16xf32>
    %134 = arith.select %132, %130, %133 : vector<4x16xi1>, vector<4x16xf32>
    %135 = vector.extract_strided_slice %100 {offsets = [0, 1], sizes = [4, 15], strides = [1, 1]} : vector<4x16xf32> to vector<4x15xf32>
    %136 = vector.extract_strided_slice %100 {offsets = [0, 0], sizes = [4, 1], strides = [1, 1]} : vector<4x16xf32> to vector<4x1xf32>
    %137 = tpu.concatenate %135, %136 in 1 : vector<4x15xf32>, vector<4x1xf32> -> vector<4x16xf32>
    %cst_47 = arith.constant 0.000000e+00 : f32
    %138 = vector.shape_cast %44 : vector<1x16xi1> to vector<1x16xi1>
    %139 = vector.broadcast %138 : vector<1x16xi1> to vector<4x16xi1>
    %140 = vector.broadcast %cst_47 : f32 to vector<4x16xf32>
    %141 = arith.select %139, %137, %140 : vector<4x16xi1>, vector<4x16xf32>
    %142 = vector.extract_strided_slice %102 {offsets = [0, 1], sizes = [4, 15], strides = [1, 1]} : vector<4x16xf32> to vector<4x15xf32>
    %143 = vector.extract_strided_slice %102 {offsets = [0, 0], sizes = [4, 1], strides = [1, 1]} : vector<4x16xf32> to vector<4x1xf32>
    %144 = tpu.concatenate %142, %143 in 1 : vector<4x15xf32>, vector<4x1xf32> -> vector<4x16xf32>
    %cst_48 = arith.constant 0.000000e+00 : f32
    %145 = vector.shape_cast %44 : vector<1x16xi1> to vector<1x16xi1>
    %146 = vector.broadcast %145 : vector<1x16xi1> to vector<4x16xi1>
    %147 = vector.broadcast %cst_48 : f32 to vector<4x16xf32>
    %148 = arith.select %146, %144, %147 : vector<4x16xi1>, vector<4x16xf32>
    %149 = vector.extract_strided_slice %100 {offsets = [0, 2], sizes = [4, 14], strides = [1, 1]} : vector<4x16xf32> to vector<4x14xf32>
    %150 = vector.extract_strided_slice %100 {offsets = [0, 0], sizes = [4, 2], strides = [1, 1]} : vector<4x16xf32> to vector<4x2xf32>
    %151 = tpu.concatenate %149, %150 in 1 : vector<4x14xf32>, vector<4x2xf32> -> vector<4x16xf32>
    %c2_i32 = arith.constant 2 : i32
    %152 = vector.broadcast %c2_i32 : i32 to vector<1x16xi32>
    %153 = arith.addi %0, %152 : vector<1x16xi32>
    %c0_i32_49 = arith.constant 0 : i32
    %154 = vector.broadcast %c0_i32_49 : i32 to vector<1x16xi32>
    %155 = arith.cmpi sge, %153, %154 : vector<1x16xi32>
    %c2_i32_50 = arith.constant 2 : i32
    %156 = vector.broadcast %c2_i32_50 : i32 to vector<1x16xi32>
    %157 = arith.addi %0, %156 : vector<1x16xi32>
    %c8_i32_51 = arith.constant 8 : i32
    %158 = vector.broadcast %c8_i32_51 : i32 to vector<1x16xi32>
    %159 = arith.cmpi slt, %157, %158 : vector<1x16xi32>
    %160 = arith.andi %155, %159 : vector<1x16xi1>
    %cst_52 = arith.constant 0.000000e+00 : f32
    %161 = vector.shape_cast %160 : vector<1x16xi1> to vector<1x16xi1>
    %162 = vector.broadcast %161 : vector<1x16xi1> to vector<4x16xi1>
    %163 = vector.broadcast %cst_52 : f32 to vector<4x16xf32>
    %164 = arith.select %162, %151, %163 : vector<4x16xi1>, vector<4x16xf32>
    %165 = tpu.concatenate %120, %127, %134, %100, %102, %141, %148 in 0 : vector<4x16xf32>, vector<4x16xf32>, vector<4x16xf32>, vector<4x16xf32>, vector<4x16xf32>, vector<4x16xf32>, vector<4x16xf32> -> vector<28x16xf32>
    %166 = tpu.concatenate %127, %134, %100, %102, %141, %148, %164 in 0 : vector<4x16xf32>, vector<4x16xf32>, vector<4x16xf32>, vector<4x16xf32>, vector<4x16xf32>, vector<4x16xf32>, vector<4x16xf32> -> vector<28x16xf32>
    %cst_53 = arith.constant dense<0.000000e+00> : vector<4x16xf32>
    %167 = tpu.matmul %103, %165, %cst_53 {dimension_numbers = #tpu.dot_dimension_numbers<[1], [0], [0], [1], [0, 0, 1, 1], [], []>} : vector<4x28xf32>, vector<28x16xf32>, vector<4x16xf32> -> vector<4x16xf32>
    %168 = vector.broadcast %104 : vector<4x1xf32> to vector<4x16xf32>
    %169 = arith.addf %167, %168 : vector<4x16xf32>
    %cst_54 = arith.constant dense<0.000000e+00> : vector<4x16xf32>
    %170 = tpu.matmul %103, %166, %cst_54 {dimension_numbers = #tpu.dot_dimension_numbers<[1], [0], [0], [1], [0, 0, 1, 1], [], []>} : vector<4x28xf32>, vector<28x16xf32>, vector<4x16xf32> -> vector<4x16xf32>
    %171 = vector.broadcast %104 : vector<4x1xf32> to vector<4x16xf32>
    %172 = arith.addf %170, %171 : vector<4x16xf32>
    %cst_55 = arith.constant 0.000000e+00 : f32
    %173 = vector.broadcast %cst_55 : f32 to vector<4x16xf32>
    %174 = arith.maximumf %169, %173 : vector<4x16xf32>
    %cst_56 = arith.constant 0.000000e+00 : f32
    %175 = vector.broadcast %cst_56 : f32 to vector<4x16xf32>
    %176 = arith.maximumf %172, %175 : vector<4x16xf32>
    %c0_57 = arith.constant 0 : index
    %c0_58 = arith.constant 0 : index
    %177 = vector.load %arg13[%c0_57, %c0_58] : memref<4x16xf32, #tpu.memory_space<vmem>>, vector<4x16xf32>
    tpu.vector_store %arg13[%c0_57, %c0_58], %174 {strides = array<i32>} : memref<4x16xf32, #tpu.memory_space<vmem>>, vector<4x16xf32>,
    %c0_59 = arith.constant 0 : index
    %c0_60 = arith.constant 0 : index
    %178 = vector.load %arg14[%c0_59, %c0_60] : memref<4x16xf32, #tpu.memory_space<vmem>>, vector<4x16xf32>
    tpu.vector_store %arg14[%c0_59, %c0_60], %176 {strides = array<i32>} : memref<4x16xf32, #tpu.memory_space<vmem>>, vector<4x16xf32>,
    return
  }
  func.func @transform_0(%arg0: i32) -> (i32, i32) {
    %c0_i32 = arith.constant 0 : i32
    %c0_i32_0 = arith.constant 0 : i32
    return %c0_i32, %arg0 : i32, i32
  }
  func.func @transform_1(%arg0: i32) -> (i32, i32) {
    %c0_i32 = arith.constant 0 : i32
    %c0_i32_0 = arith.constant 0 : i32
    return %c0_i32, %arg0 : i32, i32
  }
  func.func @transform_2(%arg0: i32) -> (i32, i32) {
    %c0_i32 = arith.constant 0 : i32
    %c0_i32_0 = arith.constant 0 : i32
    return %c0_i32, %arg0 : i32, i32
  }
  func.func @transform_3(%arg0: i32) -> (i32, i32) {
    %c0_i32 = arith.constant 0 : i32
    %c0_i32_0 = arith.constant 0 : i32
    return %c0_i32, %arg0 : i32, i32
  }
  func.func @transform_4(%arg0: i32) -> (i32, i32) {
    %c0_i32 = arith.constant 0 : i32
    %c0_i32_0 = arith.constant 0 : i32
    %c0_i32_1 = arith.constant 0 : i32
    return %c0_i32, %c0_i32_0 : i32, i32
  }
  func.func @transform_5(%arg0: i32) -> (i32, i32) {
    %c0_i32 = arith.constant 0 : i32
    %c0_i32_0 = arith.constant 0 : i32
    %c0_i32_1 = arith.constant 0 : i32
    return %c0_i32, %c0_i32_0 : i32, i32
  }
  func.func @transform_6(%arg0: i32) -> (i32, i32) {
    %c0_i32 = arith.constant 0 : i32
    %c0_i32_0 = arith.constant 0 : i32
    %c0_i32_1 = arith.constant 0 : i32
    return %c0_i32, %c0_i32_0 : i32, i32
  }
  func.func @transform_7(%arg0: i32) -> (i32, i32) {
    %c0_i32 = arith.constant 0 : i32
    %c0_i32_0 = arith.constant 0 : i32
    %c0_i32_1 = arith.constant 0 : i32
    return %c0_i32, %c0_i32_0 : i32, i32
  }
  func.func @transform_8(%arg0: i32) -> (i32, i32) {
    %c0_i32 = arith.constant 0 : i32
    %c0_i32_0 = arith.constant 0 : i32
    %c0_i32_1 = arith.constant 0 : i32
    return %c0_i32, %c0_i32_0 : i32, i32
  }
  func.func @transform_9(%arg0: i32) -> (i32, i32) {
    %c0_i32 = arith.constant 0 : i32
    %c0_i32_0 = arith.constant 0 : i32
    %c0_i32_1 = arith.constant 0 : i32
    return %c0_i32, %c0_i32_0 : i32, i32
  }
  func.func @transform_10(%arg0: i32) -> (i32, i32) {
    %c0_i32 = arith.constant 0 : i32
    %c0_i32_0 = arith.constant 0 : i32
    %c0_i32_1 = arith.constant 0 : i32
    return %c0_i32, %c0_i32_0 : i32, i32
  }
  func.func @transform_11(%arg0: i32) -> (i32, i32) {
    %c0_i32 = arith.constant 0 : i32
    %c0_i32_0 = arith.constant 0 : i32
    %c0_i32_1 = arith.constant 0 : i32
    return %c0_i32, %c0_i32_0 : i32, i32
  }
  func.func @transform_12(%arg0: i32) -> (i32, i32) {
    %c0_i32 = arith.constant 0 : i32
    %c0_i32_0 = arith.constant 0 : i32
    return %c0_i32, %arg0 : i32, i32
  }
  func.func @transform_13(%arg0: i32) -> (i32, i32) {
    %c0_i32 = arith.constant 0 : i32
    %c0_i32_0 = arith.constant 0 : i32
    return %c0_i32, %arg0 : i32, i32
  }
}

</mosaic_0001>

<llo_original>
// kernel: tpu_custom_call.1
$region0: #{tpu_custom_call.1}
  #allocation0 [shape = 'u32[]', space=smem, size = 0x4, offset = 0x4, fixed_abs, tag = 'smem constant byte address 0x4 - core index']
  #allocation1 [shape = 'u32[144,128]{1,0:T(1,128)}', space=vmem, size = 0x12000, scoped, tag = 'internal scratch']
  %s0 = inlined_call_operand.hbm [shape: s32[1,16], index: 0, kind: input, shape index: {}]
  %s1 = inlined_call_operand.vmem [shape: f32[8,16], index: 1, kind: input, shape index: {}]
  %s2 = inlined_call_operand.vmem [shape: f32[4,16], index: 2, kind: input, shape index: {}]
  %s3 = inlined_call_operand.vmem [shape: f32[4,16], index: 3, kind: input, shape index: {}]
  %s4 = inlined_call_operand.vmem [shape: f32[8,8], index: 4, kind: input, shape index: {}]
  %s5 = inlined_call_operand.vmem [shape: f32[4,1], index: 5, kind: input, shape index: {}]
  %s6 = inlined_call_operand.vmem [shape: f32[4,24], index: 6, kind: input, shape index: {}]
  %s7 = inlined_call_operand.vmem [shape: f32[4,1], index: 7, kind: input, shape index: {}]
  %s8 = inlined_call_operand.vmem [shape: f32[4,20], index: 8, kind: input, shape index: {}]
  %s9 = inlined_call_operand.vmem [shape: f32[4,1], index: 9, kind: input, shape index: {}]
  %s10 = inlined_call_operand.vmem [shape: f32[4,28], index: 10, kind: input, shape index: {}]
  %s11 = inlined_call_operand.vmem [shape: f32[4,1], index: 11, kind: input, shape index: {}]
  %s12 = inlined_call_operand.hbm [shape: f32[4,16], index: 12, kind: output, shape index: {0}]
  %s13 = inlined_call_operand.hbm [shape: f32[4,16], index: 13, kind: output, shape index: {1}]
  %14 = xla_tuple %s12, %s13
  %s15 = sld [smem:[#allocation0]]
  $region70: #{tpu_custom_call.1} parent=0
    _
  %s17 = ssub.s32 1, %s15
  %s18 = scalar_select 0, %s17, %s15
  $region1: #{tpu_custom_call.1} parent=0
    #allocation2 [shape = 'u8[512]{0}', space=vmem, size = 0x400, scoped, tag = 'input window, operand 0, single buffered']
    #allocation3 [shape = 's32[1]{0}', space=sflag, size = 0x4, scoped, tag = 'scoped memory for tpu_custom_call.1']
    #allocation4 [shape = 's32[1]{0}', space=sflag, size = 0x4, scoped, tag = 'scoped memory for tpu_custom_call.1']
    #allocation5 [shape = 'u8[2048]{0}', space=vmem, size = 0x800, scoped, tag = 'output window, operand 0, single buffered']
    #allocation6 [shape = 'u8[2048]{0}', space=vmem, size = 0x800, scoped, tag = 'output window, operand 1, single buffered']
    #allocation7 [shape = 's32[1]{0}', space=sflag, size = 0x4, scoped, tag = 'scoped memory for tpu_custom_call.1']
    %19 = vsyncpa [#allocation3], 0
    %20 = vsyncpa [#allocation4], 0
    %21 = vsyncpa [#allocation7], 0
    // Predicated region
    $region2: #{tpu_custom_call.1} parent=1 // pred_check
      _
    $region3: #{tpu_custom_call.1} parent=1 // pred_check_branch
      %23 = sbr.rel (0) target = $region5
    $region4: #{tpu_custom_call.1} parent=1 // pred_region
      %s25 = ssub.s32 16, 16
      %26 = vsyncadd [#allocation3], %s25
      %s28 = sshll.u32 [#allocation2], 4
      %s29 = int_to_ptr.vmem [resolvable:$true] %s28
      %31 = dma.hbm_to_vmem [thread:$0]  %s0, 16, %s29, [#allocation3]
    $region5: #{tpu_custom_call.1} parent=1 // pred_fallthru
      _
    // Predicated region
    $region6: #{tpu_custom_call.1} parent=1 // pred_check
      _
    $region7: #{tpu_custom_call.1} parent=1 // pred_check_branch
      %33 = sbr.rel (0) target = $region9
    $region8: #{tpu_custom_call.1} parent=1 // pred_region
      _
    $region9: #{tpu_custom_call.1} parent=1 // pred_fallthru
      _
    // Predicated region
    $region10: #{tpu_custom_call.1} parent=1 // pred_check
      _
    $region11: #{tpu_custom_call.1} parent=1 // pred_check_branch
      %35 = sbr.rel (0) target = $region13
    $region12: #{tpu_custom_call.1} parent=1 // pred_region
      _
    $region13: #{tpu_custom_call.1} parent=1 // pred_fallthru
      _
    // Predicated region
    $region14: #{tpu_custom_call.1} parent=1 // pred_check
      _
    $region15: #{tpu_custom_call.1} parent=1 // pred_check_branch
      %37 = sbr.rel (0) target = $region17
    $region16: #{tpu_custom_call.1} parent=1 // pred_region
      _
    $region17: #{tpu_custom_call.1} parent=1 // pred_fallthru
      _
    // Predicated region
    $region18: #{tpu_custom_call.1} parent=1 // pred_check
      _
    $region19: #{tpu_custom_call.1} parent=1 // pred_check_branch
      %39 = sbr.rel (0) target = $region21
    $region20: #{tpu_custom_call.1} parent=1 // pred_region
      _
    $region21: #{tpu_custom_call.1} parent=1 // pred_fallthru
      _
    // Predicated region
    $region22: #{tpu_custom_call.1} parent=1 // pred_check
      _
    $region23: #{tpu_custom_call.1} parent=1 // pred_check_branch
      %41 = sbr.rel (0) target = $region25
    $region24: #{tpu_custom_call.1} parent=1 // pred_region
      _
    $region25: #{tpu_custom_call.1} parent=1 // pred_fallthru
      _
    // Predicated region
    $region26: #{tpu_custom_call.1} parent=1 // pred_check
      _
    $region27: #{tpu_custom_call.1} parent=1 // pred_check_branch
      %43 = sbr.rel (0) target = $region29
    $region28: #{tpu_custom_call.1} parent=1 // pred_region
      _
    $region29: #{tpu_custom_call.1} parent=1 // pred_fallthru
      _
    // Predicated region
    $region30: #{tpu_custom_call.1} parent=1 // pred_check
      _
    $region31: #{tpu_custom_call.1} parent=1 // pred_check_branch
      %45 = sbr.rel (0) target = $region33
    $region32: #{tpu_custom_call.1} parent=1 // pred_region
      _
    $region33: #{tpu_custom_call.1} parent=1 // pred_fallthru
      _
    // Predicated region
    $region34: #{tpu_custom_call.1} parent=1 // pred_check
      _
    $region35: #{tpu_custom_call.1} parent=1 // pred_check_branch
      %47 = sbr.rel (0) target = $region37
    $region36: #{tpu_custom_call.1} parent=1 // pred_region
      _
    $region37: #{tpu_custom_call.1} parent=1 // pred_fallthru
      _
    // Predicated region
    $region38: #{tpu_custom_call.1} parent=1 // pred_check
      _
    $region39: #{tpu_custom_call.1} parent=1 // pred_check_branch
      %49 = sbr.rel (0) target = $region41
    $region40: #{tpu_custom_call.1} parent=1 // pred_region
      _
    $region41: #{tpu_custom_call.1} parent=1 // pred_fallthru
      _
    // Predicated region
    $region42: #{tpu_custom_call.1} parent=1 // pred_check
      _
    $region43: #{tpu_custom_call.1} parent=1 // pred_check_branch
      %51 = sbr.rel (0) target = $region45
    $region44: #{tpu_custom_call.1} parent=1 // pred_region
      _
    $region45: #{tpu_custom_call.1} parent=1 // pred_fallthru
      _
    // Predicated region
    $region46: #{tpu_custom_call.1} parent=1 // pred_check
      _
    $region47: #{tpu_custom_call.1} parent=1 // pred_check_branch
      %53 = sbr.rel (0) target = $region49
    $region48: #{tpu_custom_call.1} parent=1 // pred_region
      _
    $region49: #{tpu_custom_call.1} parent=1 // pred_fallthru
      _
    // Predicated region
    $region50: #{tpu_custom_call.1} parent=1 // pred_check
      _
    $region51: #{tpu_custom_call.1} parent=1 // pred_check_branch
      %55 = sbr.rel (0) target = $region53
    $region52: #{tpu_custom_call.1} parent=1 // pred_region
      %56 = dma.done [#allocation3], 16
    $region53: #{tpu_custom_call.1} parent=1 // pred_fallthru
      _
    %v57 = vld [vmem:[#allocation2] sm:$0x1]
    %v58 = vld [vmem:[%s1] sm:$0xff]
    %v59 = vld [vmem:[%s4] sm:$0xff]
    %vm60 = vcmask 64512
    %v62 = vsel %vm60, %v59, 0
    %64 = vmatprep.subr.mxu0 0.0
    %65 = vmatpush1.msra.mxu0 %v58
    %66 = vmatprep.subr.mxu0 0.0
    %67 = vmatpush1.msra.mxu0 0.0
    %68 = vmatprep.subr.mxu0 0.0
    %69 = vmatpush1.msra.mxu0 0.0
    %70 = vmatprep.subr.mxu0 0.0
    %71 = vmatpush1.msra.mxu0 0.0
    %72 = vmatprep.subr.mxu0 0.0
    %73 = vmatpush1.msra.mxu0 0.0
    %74 = vmatprep.subr.mxu0 0.0
    %75 = vmatpush1.msra.mxu0 0.0
    %76 = vmatprep.subr.mxu0 0.0
    %77 = vmatpush1.msra.mxu0 0.0
    %78 = vmatprep.subr.mxu0 0.0
    %79 = vmatpush1.msra.mxu0 0.0
    %80 = vmatprep.subr.mxu0 0.0
    %81 = vmatpush1.msra.mxu0 0.0
    %82 = vmatprep.subr.mxu0 0.0
    %83 = vmatpush1.msra.mxu0 0.0
    %84 = vmatprep.subr.mxu0 0.0
    %85 = vmatpush1.msra.mxu0 0.0
    %86 = vmatprep.subr.mxu0 0.0
    %87 = vmatpush1.msra.mxu0 0.0
    %88 = vmatprep.subr.mxu0 0.0
    %89 = vmatpush1.msra.mxu0 0.0
    %90 = vmatprep.subr.mxu0 0.0
    %91 = vmatpush1.msra.mxu0 0.0
    %92 = vmatprep.subr.mxu0 0.0
    %93 = vmatpush1.msra.mxu0 0.0
    %94 = vmatprep.subr.mxu0 0.0
    %95 = vmatpush1.msra.mxu0 0.0
    %96 = vmatprep.subr.mxu0 0.0
    %97 = vmatpush1.msra.mxu0 0.0
    %98 = vmatprep.subr.mxu0 0.0
    %99 = vmatpush1.msra.mxu0 0.0
    %100 = vmatprep.subr.mxu0 0.0
    %101 = vmatpush1.msra.mxu0 0.0
    %102 = vmatprep.subr.mxu0 0.0
    %103 = vmatpush1.msra.mxu0 0.0
    %104 = vmatprep.subr.mxu0 0.0
    %105 = vmatpush1.msra.mxu0 0.0
    %106 = vmatprep.subr.mxu0 0.0
    %107 = vmatpush1.msra.mxu0 0.0
    %108 = vmatprep.subr.mxu0 0.0
    %109 = vmatpush1.msra.mxu0 0.0
    %110 = vmatprep.subr.mxu0 0.0
    %111 = vmatpush1.msra.mxu0 0.0
    %112 = vmatprep.subr.mxu0 0.0
    %113 = vmatpush1.msra.mxu0 0.0
    %114 = vmatprep.subr.mxu0 0.0
    %115 = vmatpush1.msra.mxu0 0.0
    %116 = vmatprep.subr.mxu0 0.0
    %117 = vmatpush1.msra.mxu0 0.0
    %118 = vmatprep.subr.mxu0 0.0
    %119 = vmatpush1.msra.mxu0 0.0
    %120 = vmatprep.subr.mxu0 0.0
    %121 = vmatpush1.msra.mxu0 0.0
    %122 = vmatprep.subr.mxu0 0.0
    %123 = vmatpush1.msra.mxu0 0.0
    %124 = vmatprep.subr.mxu0 0.0
    %125 = vmatpush1.msra.mxu0 0.0
    %126 = vmatprep.subr.mxu0 0.0
    %127 = vmatpush1.msra.mxu0 0.0
    %128 = vmatprep.mubr.f32.mxu0 0.0
    %129 = vmatmul.mubr.f32.gmra.mrb[0].mxu0 %v62
    %v130 = vpop.f32.mrb[0].mxu0
    %v131 = vadd.f32 0.0, %v130
    %v132 = vpop.f32.mrb[0].mxu0
    %133 = vdwg.mxu0
    %v134 = vld [vmem:[%s5] sm:$0xf]
    %136 = vset.pattern.permute.xlu0 0
    %137 = vperm.xlu0 %136, %v134
    %v138 = vpop.permute.xlu0 %137
    %v140 = vadd.f32 %v131, %v138
    %v141 = vrot.slane %v138, 4
    %v143 = vadd.f32 %v131, %v141
    %v144 = vld [vmem:[%s2] sm:$0xf]
    %v146 = vrot.slane %v144, 4
    %vm148 = vcmask 1043456
    %v149 = vsel %vm148, %v140, %v146
    %v150 = vld [vmem:[%s3] sm:$0xf]
    %v152 = vrot.slane %v143, 4
    %v155 = vrot.slane %v150, 4
    %v157 = vsel %vm148, %v152, %v155
    %v158 = vld [vmem:[%s6] sm:$0xf]
    %v159 = vld [vmem:[%s7] sm:$0xf]
    %161 = vrot.lane.b32.xlu0 %v157, 113
    %v162 = vpop.permute.xlu0 %161
    %164 = vrot.lane.b32.xlu0 %v157, 1
    %v165 = vpop.permute.xlu0 %164
    %vm167 = vcmask 7168
    %v168 = vsel %vm167, %v162, %v165
    %v169 = vadd.s32 %v57, 4294967295
    %vm170 = vcmp.ge.s32.totalorder %v169, 0
    %vm171 = vcmp.lt.s32.totalorder %v169, 8
    %vm172 = vmand %vm170, %vm171
    %v173 = vsel %vm172, 1, 0
    %v174 = vlaneseq
    %v175 = vshrl.u32 %v174, 7
    %v176 = vsub.s32 0, %v175
    %v177 = vrot.slane %v173, %v176
    %vm178 = vcmp.eq.s32.totalorder %v177, 1
    %v179 = vsel %vm178, %v168, 0.0
    %181 = vrot.lane.b32.xlu0 %v149, 127
    %v182 = vpop.permute.xlu0 %181
    %184 = vrot.lane.b32.xlu0 %v149, 15
    %v185 = vpop.permute.xlu0 %184
    %vm187 = vcmask 121856
    %v188 = vsel %vm187, %v182, %v185
    %v189 = vadd.s32 %v57, 1
    %vm190 = vcmp.ge.s32.totalorder %v189, 0
    %vm191 = vcmp.lt.s32.totalorder %v189, 8
    %vm192 = vmand %vm190, %vm191
    %v193 = vsel %vm192, 1, 0
    %v194 = vlaneseq
    %v195 = vshrl.u32 %v194, 7
    %v196 = vsub.s32 0, %v195
    %v197 = vrot.slane %v193, %v196
    %vm198 = vcmp.eq.s32.totalorder %v197, 1
    %v199 = vsel %vm198, %v188, 0.0
    %201 = vset.pattern.permute.xlu0 0
    %202 = vperm.xlu0 %201, %v159
    %v203 = vpop.permute.xlu0 %202
    %vm205 = vcmask 195584
    %v207 = vsel %vm205, %v158, 0
    %209 = vmatprep.subr.mxu0 0.0
    %210 = vmatpush1.msra.mxu0 %v179
    %211 = vmatprep.subr.mxu0 0.0
    %212 = vmatpush1.msra.mxu0 %v149
    %213 = vmatprep.subr.mxu0 0.0
    %214 = vmatpush1.msra.mxu0 %v157
    %215 = vmatprep.subr.mxu0 0.0
    %216 = vmatpush1.msra.mxu0 0.0
    %217 = vmatprep.subr.mxu0 0.0
    %218 = vmatpush1.msra.mxu0 0.0
    %219 = vmatprep.subr.mxu0 0.0
    %220 = vmatpush1.msra.mxu0 0.0
    %221 = vmatprep.subr.mxu0 0.0
    %222 = vmatpush1.msra.mxu0 0.0
    %223 = vmatprep.subr.mxu0 0.0
    %224 = vmatpush1.msra.mxu0 0.0
    %225 = vmatprep.subr.mxu0 0.0
    %226 = vmatpush1.msra.mxu0 0.0
    %227 = vmatprep.subr.mxu0 0.0
    %228 = vmatpush1.msra.mxu0 0.0
    %229 = vmatprep.subr.mxu0 0.0
    %230 = vmatpush1.msra.mxu0 0.0
    %231 = vmatprep.subr.mxu0 0.0
    %232 = vmatpush1.msra.mxu0 0.0
    %233 = vmatprep.subr.mxu0 0.0
    %234 = vmatpush1.msra.mxu0 0.0
    %235 = vmatprep.subr.mxu0 0.0
    %236 = vmatpush1.msra.mxu0 0.0
    %237 = vmatprep.subr.mxu0 0.0
    %238 = vmatpush1.msra.mxu0 0.0
    %239 = vmatprep.subr.mxu0 0.0
    %240 = vmatpush1.msra.mxu0 0.0
    %241 = vmatprep.subr.mxu0 0.0
    %242 = vmatpush1.msra.mxu0 0.0
    %243 = vmatprep.subr.mxu0 0.0
    %244 = vmatpush1.msra.mxu0 0.0
    %245 = vmatprep.subr.mxu0 0.0
    %246 = vmatpush1.msra.mxu0 0.0
    %247 = vmatprep.subr.mxu0 0.0
    %248 = vmatpush1.msra.mxu0 0.0
    %249 = vmatprep.subr.mxu0 0.0
    %250 = vmatpush1.msra.mxu0 0.0
    %251 = vmatprep.subr.mxu0 0.0
    %252 = vmatpush1.msra.mxu0 0.0
    %253 = vmatprep.subr.mxu0 0.0
    %254 = vmatpush1.msra.mxu0 0.0
    %255 = vmatprep.subr.mxu0 0.0
    %256 = vmatpush1.msra.mxu0 0.0
    %257 = vmatprep.subr.mxu0 0.0
    %258 = vmatpush1.msra.mxu0 0.0
    %259 = vmatprep.subr.mxu0 0.0
    %260 = vmatpush1.msra.mxu0 0.0
    %261 = vmatprep.subr.mxu0 0.0
    %262 = vmatpush1.msra.mxu0 0.0
    %263 = vmatprep.subr.mxu0 0.0
    %264 = vmatpush1.msra.mxu0 0.0
    %265 = vmatprep.subr.mxu0 0.0
    %266 = vmatpush1.msra.mxu0 0.0
    %267 = vmatprep.subr.mxu0 0.0
    %268 = vmatpush1.msra.mxu0 0.0
    %269 = vmatprep.subr.mxu0 0.0
    %270 = vmatpush1.msra.mxu0 0.0
    %271 = vmatprep.subr.mxu0 0.0
    %272 = vmatpush1.msra.mxu0 0.0
    %273 = vmatprep.mubr.f32.mxu0 0.0
    %274 = vmatmul.mubr.f32.gmra.mrb[0].mxu0 %v207
    %v275 = vpop.f32.mrb[0].mxu0
    %v276 = vadd.f32 %v203, %v275
    %v277 = vpop.f32.mrb[0].mxu0
    %278 = vdwg.mxu0
    %279 = vmatprep.subr.mxu0 0.0
    %280 = vmatpush1.msra.mxu0 %v149
    %281 = vmatprep.subr.mxu0 0.0
    %282 = vmatpush1.msra.mxu0 %v157
    %283 = vmatprep.subr.mxu0 0.0
    %284 = vmatpush1.msra.mxu0 %v199
    %285 = vmatprep.subr.mxu0 0.0
    %286 = vmatpush1.msra.mxu0 0.0
    %287 = vmatprep.subr.mxu0 0.0
    %288 = vmatpush1.msra.mxu0 0.0
    %289 = vmatprep.subr.mxu0 0.0
    %290 = vmatpush1.msra.mxu0 0.0
    %291 = vmatprep.subr.mxu0 0.0
    %292 = vmatpush1.msra.mxu0 0.0
    %293 = vmatprep.subr.mxu0 0.0
    %294 = vmatpush1.msra.mxu0 0.0
    %295 = vmatprep.subr.mxu0 0.0
    %296 = vmatpush1.msra.mxu0 0.0
    %297 = vmatprep.subr.mxu0 0.0
    %298 = vmatpush1.msra.mxu0 0.0
    %299 = vmatprep.subr.mxu0 0.0
    %300 = vmatpush1.msra.mxu0 0.0
    %301 = vmatprep.subr.mxu0 0.0
    %302 = vmatpush1.msra.mxu0 0.0
    %303 = vmatprep.subr.mxu0 0.0
    %304 = vmatpush1.msra.mxu0 0.0
    %305 = vmatprep.subr.mxu0 0.0
    %306 = vmatpush1.msra.mxu0 0.0
    %307 = vmatprep.subr.mxu0 0.0
    %308 = vmatpush1.msra.mxu0 0.0
    %309 = vmatprep.subr.mxu0 0.0
    %310 = vmatpush1.msra.mxu0 0.0
    %311 = vmatprep.subr.mxu0 0.0
    %312 = vmatpush1.msra.mxu0 0.0
    %313 = vmatprep.subr.mxu0 0.0
    %314 = vmatpush1.msra.mxu0 0.0
    %315 = vmatprep.subr.mxu0 0.0
    %316 = vmatpush1.msra.mxu0 0.0
    %317 = vmatprep.subr.mxu0 0.0
    %318 = vmatpush1.msra.mxu0 0.0
    %319 = vmatprep.subr.mxu0 0.0
    %320 = vmatpush1.msra.mxu0 0.0
    %321 = vmatprep.subr.mxu0 0.0
    %322 = vmatpush1.msra.mxu0 0.0
    %323 = vmatprep.subr.mxu0 0.0
    %324 = vmatpush1.msra.mxu0 0.0
    %325 = vmatprep.subr.mxu0 0.0
    %326 = vmatpush1.msra.mxu0 0.0
    %327 = vmatprep.subr.mxu0 0.0
    %328 = vmatpush1.msra.mxu0 0.0
    %329 = vmatprep.subr.mxu0 0.0
    %330 = vmatpush1.msra.mxu0 0.0
    %331 = vmatprep.subr.mxu0 0.0
    %332 = vmatpush1.msra.mxu0 0.0
    %333 = vmatprep.subr.mxu0 0.0
    %334 = vmatpush1.msra.mxu0 0.0
    %335 = vmatprep.subr.mxu0 0.0
    %336 = vmatpush1.msra.mxu0 0.0
    %337 = vmatprep.subr.mxu0 0.0
    %338 = vmatpush1.msra.mxu0 0.0
    %339 = vmatprep.subr.mxu0 0.0
    %340 = vmatpush1.msra.mxu0 0.0
    %341 = vmatprep.subr.mxu0 0.0
    %342 = vmatpush1.msra.mxu0 0.0
    %343 = vmatprep.mubr.f32.mxu0 0.0
    %344 = vmatmul.mubr.f32.gmra.mrb[0].mxu0 %v207
    %v345 = vpop.f32.mrb[0].mxu0
    %v346 = vadd.f32 %v203, %v345
    %v347 = vpop.f32.mrb[0].mxu0
    %348 = vdwg.mxu0
    %v349 = vmax.f32 %v276, 0.0
    %v350 = vmax.f32 %v346, 0.0
    %v351 = vld [vmem:[%s8] sm:$0xf]
    %v352 = vld [vmem:[%s9] sm:$0xf]
    %354 = vrot.lane.b32.xlu0 %v349, 113
    %v355 = vpop.permute.xlu0 %354
    %357 = vrot.lane.b32.xlu0 %v349, 1
    %v358 = vpop.permute.xlu0 %357
    %v360 = vsel %vm167, %v355, %v358
    %v361 = vsel %vm178, %v360, 0.0
    %363 = vrot.lane.b32.xlu0 %v350, 113
    %v364 = vpop.permute.xlu0 %363
    %366 = vrot.lane.b32.xlu0 %v350, 1
    %v367 = vpop.permute.xlu0 %366
    %v369 = vsel %vm167, %v364, %v367
    %v370 = vsel %vm178, %v369, 0.0
    %371 = vrot.lane.b32.xlu0 %v349, 127
    %v372 = vpop.permute.xlu0 %371
    %374 = vrot.lane.b32.xlu0 %v349, 15
    %v375 = vpop.permute.xlu0 %374
    %v377 = vsel %vm187, %v372, %v375
    %v378 = vsel %vm198, %v377, 0.0
    %379 = vrot.lane.b32.xlu0 %v350, 127
    %v380 = vpop.permute.xlu0 %379
    %382 = vrot.lane.b32.xlu0 %v350, 15
    %v383 = vpop.permute.xlu0 %382
    %v385 = vsel %vm187, %v380, %v383
    %v386 = vsel %vm198, %v385, 0.0
    %v388 = vrot.slane %v370, 4
    %v390 = vrot.slane %v350, 4
    %v392 = vsel %vm148, %v361, %v388
    %v393 = vsel %vm148, %v349, %v390
    %v394 = vrot.slane %v349, 4
    %v397 = vrot.slane %v378, 4
    %v399 = vsel %vm148, %v370, %v394
    %v400 = vsel %vm148, %v350, %v397
    %402 = vset.pattern.permute.xlu0 0
    %403 = vperm.xlu0 %402, %v352
    %v404 = vpop.permute.xlu0 %403
    %vm406 = vcmask 162816
    %v408 = vsel %vm406, %v351, 0
    %v410 = vsel %vm148, %v378, 0
    %412 = vmatprep.subr.mxu0 0.0
    %413 = vmatpush1.msra.mxu0 %v392
    %414 = vmatprep.subr.mxu0 0.0
    %415 = vmatpush1.msra.mxu0 %v393
    %416 = vmatprep.subr.mxu0 0.0
    %417 = vmatpush1.msra.mxu0 %v410
    %418 = vmatprep.subr.mxu0 0.0
    %419 = vmatpush1.msra.mxu0 0.0
    %420 = vmatprep.subr.mxu0 0.0
    %421 = vmatpush1.msra.mxu0 0.0
    %422 = vmatprep.subr.mxu0 0.0
    %423 = vmatpush1.msra.mxu0 0.0
    %424 = vmatprep.subr.mxu0 0.0
    %425 = vmatpush1.msra.mxu0 0.0
    %426 = vmatprep.subr.mxu0 0.0
    %427 = vmatpush1.msra.mxu0 0.0
    %428 = vmatprep.subr.mxu0 0.0
    %429 = vmatpush1.msra.mxu0 0.0
    %430 = vmatprep.subr.mxu0 0.0
    %431 = vmatpush1.msra.mxu0 0.0
    %432 = vmatprep.subr.mxu0 0.0
    %433 = vmatpush1.msra.mxu0 0.0
    %434 = vmatprep.subr.mxu0 0.0
    %435 = vmatpush1.msra.mxu0 0.0
    %436 = vmatprep.subr.mxu0 0.0
    %437 = vmatpush1.msra.mxu0 0.0
    %438 = vmatprep.subr.mxu0 0.0
    %439 = vmatpush1.msra.mxu0 0.0
    %440 = vmatprep.subr.mxu0 0.0
    %441 = vmatpush1.msra.mxu0 0.0
    %442 = vmatprep.subr.mxu0 0.0
    %443 = vmatpush1.msra.mxu0 0.0
    %444 = vmatprep.subr.mxu0 0.0
    %445 = vmatpush1.msra.mxu0 0.0
    %446 = vmatprep.subr.mxu0 0.0
    %447 = vmatpush1.msra.mxu0 0.0
    %448 = vmatprep.subr.mxu0 0.0
    %449 = vmatpush1.msra.mxu0 0.0
    %450 = vmatprep.subr.mxu0 0.0
    %451 = vmatpush1.msra.mxu0 0.0
    %452 = vmatprep.subr.mxu0 0.0
    %453 = vmatpush1.msra.mxu0 0.0
    %454 = vmatprep.subr.mxu0 0.0
    %455 = vmatpush1.msra.mxu0 0.0
    %456 = vmatprep.subr.mxu0 0.0
    %457 = vmatpush1.msra.mxu0 0.0
    %458 = vmatprep.subr.mxu0 0.0
    %459 = vmatpush1.msra.mxu0 0.0
    %460 = vmatprep.subr.mxu0 0.0
    %461 = vmatpush1.msra.mxu0 0.0
    %462 = vmatprep.subr.mxu0 0.0
    %463 = vmatpush1.msra.mxu0 0.0
    %464 = vmatprep.subr.mxu0 0.0
    %465 = vmatpush1.msra.mxu0 0.0
    %466 = vmatprep.subr.mxu0 0.0
    %467 = vmatpush1.msra.mxu0 0.0
    %468 = vmatprep.subr.mxu0 0.0
    %469 = vmatpush1.msra.mxu0 0.0
    %470 = vmatprep.subr.mxu0 0.0
    %471 = vmatpush1.msra.mxu0 0.0
    %472 = vmatprep.subr.mxu0 0.0
    %473 = vmatpush1.msra.mxu0 0.0
    %474 = vmatprep.subr.mxu0 0.0
    %475 = vmatpush1.msra.mxu0 0.0
    %476 = vmatprep.mubr.f32.mxu0 0.0
    %477 = vmatmul.mubr.f32.gmra.mrb[0].mxu0 %v408
    %v478 = vpop.f32.mrb[0].mxu0
    %v479 = vadd.f32 %v404, %v478
    %v480 = vpop.f32.mrb[0].mxu0
    %481 = vdwg.mxu0
    %v483 = vsel %vm148, %v386, 0
    %485 = vmatprep.subr.mxu0 0.0
    %486 = vmatpush1.msra.mxu0 %v399
    %487 = vmatprep.subr.mxu0 0.0
    %488 = vmatpush1.msra.mxu0 %v400
    %489 = vmatprep.subr.mxu0 0.0
    %490 = vmatpush1.msra.mxu0 %v483
    %491 = vmatprep.subr.mxu0 0.0
    %492 = vmatpush1.msra.mxu0 0.0
    %493 = vmatprep.subr.mxu0 0.0
    %494 = vmatpush1.msra.mxu0 0.0
    %495 = vmatprep.subr.mxu0 0.0
    %496 = vmatpush1.msra.mxu0 0.0
    %497 = vmatprep.subr.mxu0 0.0
    %498 = vmatpush1.msra.mxu0 0.0
    %499 = vmatprep.subr.mxu0 0.0
    %500 = vmatpush1.msra.mxu0 0.0
    %501 = vmatprep.subr.mxu0 0.0
    %502 = vmatpush1.msra.mxu0 0.0
    %503 = vmatprep.subr.mxu0 0.0
    %504 = vmatpush1.msra.mxu0 0.0
    %505 = vmatprep.subr.mxu0 0.0
    %506 = vmatpush1.msra.mxu0 0.0
    %507 = vmatprep.subr.mxu0 0.0
    %508 = vmatpush1.msra.mxu0 0.0
    %509 = vmatprep.subr.mxu0 0.0
    %510 = vmatpush1.msra.mxu0 0.0
    %511 = vmatprep.subr.mxu0 0.0
    %512 = vmatpush1.msra.mxu0 0.0
    %513 = vmatprep.subr.mxu0 0.0
    %514 = vmatpush1.msra.mxu0 0.0
    %515 = vmatprep.subr.mxu0 0.0
    %516 = vmatpush1.msra.mxu0 0.0
    %517 = vmatprep.subr.mxu0 0.0
    %518 = vmatpush1.msra.mxu0 0.0
    %519 = vmatprep.subr.mxu0 0.0
    %520 = vmatpush1.msra.mxu0 0.0
    %521 = vmatprep.subr.mxu0 0.0
    %522 = vmatpush1.msra.mxu0 0.0
    %523 = vmatprep.subr.mxu0 0.0
    %524 = vmatpush1.msra.mxu0 0.0
    %525 = vmatprep.subr.mxu0 0.0
    %526 = vmatpush1.msra.mxu0 0.0
    %527 = vmatprep.subr.mxu0 0.0
    %528 = vmatpush1.msra.mxu0 0.0
    %529 = vmatprep.subr.mxu0 0.0
    %530 = vmatpush1.msra.mxu0 0.0
    %531 = vmatprep.subr.mxu0 0.0
    %532 = vmatpush1.msra.mxu0 0.0
    %533 = vmatprep.subr.mxu0 0.0
    %534 = vmatpush1.msra.mxu0 0.0
    %535 = vmatprep.subr.mxu0 0.0
    %536 = vmatpush1.msra.mxu0 0.0
    %537 = vmatprep.subr.mxu0 0.0
    %538 = vmatpush1.msra.mxu0 0.0
    %539 = vmatprep.subr.mxu0 0.0
    %540 = vmatpush1.msra.mxu0 0.0
    %541 = vmatprep.subr.mxu0 0.0
    %542 = vmatpush1.msra.mxu0 0.0
    %543 = vmatprep.subr.mxu0 0.0
    %544 = vmatpush1.msra.mxu0 0.0
    %545 = vmatprep.subr.mxu0 0.0
    %546 = vmatpush1.msra.mxu0 0.0
    %547 = vmatprep.subr.mxu0 0.0
    %548 = vmatpush1.msra.mxu0 0.0
    %549 = vmatprep.mubr.f32.mxu0 0.0
    %550 = vmatmul.mubr.f32.gmra.mrb[0].mxu0 %v408
    %v551 = vpop.f32.mrb[0].mxu0
    %v552 = vadd.f32 %v404, %v551
    %v553 = vpop.f32.mrb[0].mxu0
    %554 = vdwg.mxu0
    %v555 = vmax.f32 %v479, 0.0
    %v556 = vmax.f32 %v552, 0.0
    %v557 = vld [vmem:[%s10] sm:$0xf]
    %v558 = vld [vmem:[%s11] sm:$0xf]
    %560 = vrot.lane.b32.xlu0 %v556, 114
    %v561 = vpop.permute.xlu0 %560
    %563 = vrot.lane.b32.xlu0 %v556, 2
    %v564 = vpop.permute.xlu0 %563
    %vm566 = vcmask 15360
    %v567 = vsel %vm566, %v561, %v564
    %v568 = vadd.s32 %v57, 4294967294
    %vm569 = vcmp.ge.s32.totalorder %v568, 0
    %vm570 = vcmp.lt.s32.totalorder %v568, 8
    %vm571 = vmand %vm569, %vm570
    %v572 = vsel %vm571, 1, 0
    %v573 = vlaneseq
    %v574 = vshrl.u32 %v573, 7
    %v575 = vsub.s32 0, %v574
    %v576 = vrot.slane %v572, %v575
    %vm577 = vcmp.eq.s32.totalorder %v576, 1
    %v578 = vsel %vm577, %v567, 0.0
    %580 = vrot.lane.b32.xlu0 %v555, 113
    %v581 = vpop.permute.xlu0 %580
    %583 = vrot.lane.b32.xlu0 %v555, 1
    %v584 = vpop.permute.xlu0 %583
    %v586 = vsel %vm167, %v581, %v584
    %v587 = vsel %vm178, %v586, 0.0
    %588 = vrot.lane.b32.xlu0 %v556, 113
    %v589 = vpop.permute.xlu0 %588
    %591 = vrot.lane.b32.xlu0 %v556, 1
    %v592 = vpop.permute.xlu0 %591
    %v594 = vsel %vm167, %v589, %v592
    %v595 = vsel %vm178, %v594, 0.0
    %596 = vrot.lane.b32.xlu0 %v555, 127
    %v597 = vpop.permute.xlu0 %596
    %599 = vrot.lane.b32.xlu0 %v555, 15
    %v600 = vpop.permute.xlu0 %599
    %v602 = vsel %vm187, %v597, %v600
    %v603 = vsel %vm198, %v602, 0.0
    %604 = vrot.lane.b32.xlu0 %v556, 127
    %v605 = vpop.permute.xlu0 %604
    %607 = vrot.lane.b32.xlu0 %v556, 15
    %v608 = vpop.permute.xlu0 %607
    %v610 = vsel %vm187, %v605, %v608
    %v611 = vsel %vm198, %v610, 0.0
    %612 = vrot.lane.b32.xlu0 %v555, 126
    %v613 = vpop.permute.xlu0 %612
    %615 = vrot.lane.b32.xlu0 %v555, 14
    %v616 = vpop.permute.xlu0 %615
    %vm618 = vcmask 113664
    %v619 = vsel %vm618, %v613, %v616
    %v620 = vadd.s32 %v57, 2
    %vm621 = vcmp.ge.s32.totalorder %v620, 0
    %vm622 = vcmp.lt.s32.totalorder %v620, 8
    %vm623 = vmand %vm621, %vm622
    %v624 = vsel %vm623, 1, 0
    %v625 = vlaneseq
    %v626 = vshrl.u32 %v625, 7
    %v627 = vsub.s32 0, %v626
    %v628 = vrot.slane %v624, %v627
    %vm629 = vcmp.eq.s32.totalorder %v628, 1
    %v630 = vsel %vm629, %v619, 0.0
    %v632 = vrot.slane %v587, 4
    %v634 = vrot.slane %v555, 4
    %v637 = vrot.slane %v603, 4
    %v639 = vsel %vm148, %v578, %v632
    %v640 = vsel %vm148, %v595, %v634
    %v641 = vsel %vm148, %v556, %v637
    %v643 = vrot.slane %v595, 4
    %v645 = vrot.slane %v556, 4
    %v648 = vrot.slane %v611, 4
    %v650 = vsel %vm148, %v587, %v643
    %v651 = vsel %vm148, %v555, %v645
    %v652 = vsel %vm148, %v603, %v648
    %654 = vset.pattern.permute.xlu0 0
    %655 = vperm.xlu0 %654, %v558
    %v656 = vpop.permute.xlu0 %655
    %vm658 = vcmask 228352
    %v660 = vsel %vm658, %v557, 0
    %v662 = vsel %vm148, %v611, 0
    %664 = vmatprep.subr.mxu0 0.0
    %665 = vmatpush1.msra.mxu0 %v639
    %666 = vmatprep.subr.mxu0 0.0
    %667 = vmatpush1.msra.mxu0 %v640
    %668 = vmatprep.subr.mxu0 0.0
    %669 = vmatpush1.msra.mxu0 %v641
    %670 = vmatprep.subr.mxu0 0.0
    %671 = vmatpush1.msra.mxu0 %v662
    %672 = vmatprep.subr.mxu0 0.0
    %673 = vmatpush1.msra.mxu0 0.0
    %674 = vmatprep.subr.mxu0 0.0
    %675 = vmatpush1.msra.mxu0 0.0
    %676 = vmatprep.subr.mxu0 0.0
    %677 = vmatpush1.msra.mxu0 0.0
    %678 = vmatprep.subr.mxu0 0.0
    %679 = vmatpush1.msra.mxu0 0.0
    %680 = vmatprep.subr.mxu0 0.0
    %681 = vmatpush1.msra.mxu0 0.0
    %682 = vmatprep.subr.mxu0 0.0
    %683 = vmatpush1.msra.mxu0 0.0
    %684 = vmatprep.subr.mxu0 0.0
    %685 = vmatpush1.msra.mxu0 0.0
    %686 = vmatprep.subr.mxu0 0.0
    %687 = vmatpush1.msra.mxu0 0.0
    %688 = vmatprep.subr.mxu0 0.0
    %689 = vmatpush1.msra.mxu0 0.0
    %690 = vmatprep.subr.mxu0 0.0
    %691 = vmatpush1.msra.mxu0 0.0
    %692 = vmatprep.subr.mxu0 0.0
    %693 = vmatpush1.msra.mxu0 0.0
    %694 = vmatprep.subr.mxu0 0.0
    %695 = vmatpush1.msra.mxu0 0.0
    %696 = vmatprep.subr.mxu0 0.0
    %697 = vmatpush1.msra.mxu0 0.0
    %698 = vmatprep.subr.mxu0 0.0
    %699 = vmatpush1.msra.mxu0 0.0
    %700 = vmatprep.subr.mxu0 0.0
    %701 = vmatpush1.msra.mxu0 0.0
    %702 = vmatprep.subr.mxu0 0.0
    %703 = vmatpush1.msra.mxu0 0.0
    %704 = vmatprep.subr.mxu0 0.0
    %705 = vmatpush1.msra.mxu0 0.0
    %706 = vmatprep.subr.mxu0 0.0
    %707 = vmatpush1.msra.mxu0 0.0
    %708 = vmatprep.subr.mxu0 0.0
    %709 = vmatpush1.msra.mxu0 0.0
    %710 = vmatprep.subr.mxu0 0.0
    %711 = vmatpush1.msra.mxu0 0.0
    %712 = vmatprep.subr.mxu0 0.0
    %713 = vmatpush1.msra.mxu0 0.0
    %714 = vmatprep.subr.mxu0 0.0
    %715 = vmatpush1.msra.mxu0 0.0
    %716 = vmatprep.subr.mxu0 0.0
    %717 = vmatpush1.msra.mxu0 0.0
    %718 = vmatprep.subr.mxu0 0.0
    %719 = vmatpush1.msra.mxu0 0.0
    %720 = vmatprep.subr.mxu0 0.0
    %721 = vmatpush1.msra.mxu0 0.0
    %722 = vmatprep.subr.mxu0 0.0
    %723 = vmatpush1.msra.mxu0 0.0
    %724 = vmatprep.subr.mxu0 0.0
    %725 = vmatpush1.msra.mxu0 0.0
    %726 = vmatprep.subr.mxu0 0.0
    %727 = vmatpush1.msra.mxu0 0.0
    %728 = vmatprep.mubr.f32.mxu0 0.0
    %729 = vmatmul.mubr.f32.gmra.mrb[0].mxu0 %v660
    %v730 = vpop.f32.mrb[0].mxu0
    %v731 = vadd.f32 %v656, %v730
    %v732 = vpop.f32.mrb[0].mxu0
    %733 = vdwg.mxu0
    %v735 = vsel %vm148, %v630, 0
    %737 = vmatprep.subr.mxu0 0.0
    %738 = vmatpush1.msra.mxu0 %v650
    %739 = vmatprep.subr.mxu0 0.0
    %740 = vmatpush1.msra.mxu0 %v651
    %741 = vmatprep.subr.mxu0 0.0
    %742 = vmatpush1.msra.mxu0 %v652
    %743 = vmatprep.subr.mxu0 0.0
    %744 = vmatpush1.msra.mxu0 %v735
    %745 = vmatprep.subr.mxu0 0.0
    %746 = vmatpush1.msra.mxu0 0.0
    %747 = vmatprep.subr.mxu0 0.0
    %748 = vmatpush1.msra.mxu0 0.0
    %749 = vmatprep.subr.mxu0 0.0
    %750 = vmatpush1.msra.mxu0 0.0
    %751 = vmatprep.subr.mxu0 0.0
    %752 = vmatpush1.msra.mxu0 0.0
    %753 = vmatprep.subr.mxu0 0.0
    %754 = vmatpush1.msra.mxu0 0.0
    %755 = vmatprep.subr.mxu0 0.0
    %756 = vmatpush1.msra.mxu0 0.0
    %757 = vmatprep.subr.mxu0 0.0
    %758 = vmatpush1.msra.mxu0 0.0
    %759 = vmatprep.subr.mxu0 0.0
    %760 = vmatpush1.msra.mxu0 0.0
    %761 = vmatprep.subr.mxu0 0.0
    %762 = vmatpush1.msra.mxu0 0.0
    %763 = vmatprep.subr.mxu0 0.0
    %764 = vmatpush1.msra.mxu0 0.0
    %765 = vmatprep.subr.mxu0 0.0
    %766 = vmatpush1.msra.mxu0 0.0
    %767 = vmatprep.subr.mxu0 0.0
    %768 = vmatpush1.msra.mxu0 0.0
    %769 = vmatprep.subr.mxu0 0.0
    %770 = vmatpush1.msra.mxu0 0.0
    %771 = vmatprep.subr.mxu0 0.0
    %772 = vmatpush1.msra.mxu0 0.0
    %773 = vmatprep.subr.mxu0 0.0
    %774 = vmatpush1.msra.mxu0 0.0
    %775 = vmatprep.subr.mxu0 0.0
    %776 = vmatpush1.msra.mxu0 0.0
    %777 = vmatprep.subr.mxu0 0.0
    %778 = vmatpush1.msra.mxu0 0.0
    %779 = vmatprep.subr.mxu0 0.0
    %780 = vmatpush1.msra.mxu0 0.0
    %781 = vmatprep.subr.mxu0 0.0
    %782 = vmatpush1.msra.mxu0 0.0
    %783 = vmatprep.subr.mxu0 0.0
    %784 = vmatpush1.msra.mxu0 0.0
    %785 = vmatprep.subr.mxu0 0.0
    %786 = vmatpush1.msra.mxu0 0.0
    %787 = vmatprep.subr.mxu0 0.0
    %788 = vmatpush1.msra.mxu0 0.0
    %789 = vmatprep.subr.mxu0 0.0
    %790 = vmatpush1.msra.mxu0 0.0
    %791 = vmatprep.subr.mxu0 0.0
    %792 = vmatpush1.msra.mxu0 0.0
    %793 = vmatprep.subr.mxu0 0.0
    %794 = vmatpush1.msra.mxu0 0.0
    %795 = vmatprep.subr.mxu0 0.0
    %796 = vmatpush1.msra.mxu0 0.0
    %797 = vmatprep.subr.mxu0 0.0
    %798 = vmatpush1.msra.mxu0 0.0
    %799 = vmatprep.subr.mxu0 0.0
    %800 = vmatpush1.msra.mxu0 0.0
    %801 = vmatprep.mubr.f32.mxu0 0.0
    %802 = vmatmul.mubr.f32.gmra.mrb[0].mxu0 %v660
    %v803 = vpop.f32.mrb[0].mxu0
    %v804 = vadd.f32 %v656, %v803
    %v805 = vpop.f32.mrb[0].mxu0
    %806 = vdwg.mxu0
    %v807 = vmax.f32 %v731, 0.0
    %v808 = vmax.f32 %v804, 0.0
    %vm809 = vcmask 125952
    %810 = vst.msk [vmem:[#allocation5] sm:$0xf] %vm809, %v807
    %811 = vst.msk [vmem:[#allocation6] sm:$0xf] %vm809, %v808
    // Predicated region
    $region54: #{tpu_custom_call.1} parent=1 // pred_check
      _
    $region55: #{tpu_custom_call.1} parent=1 // pred_check_branch
      %813 = sbr.rel (0) target = $region57
    $region56: #{tpu_custom_call.1} parent=1 // pred_region
      %s815 = ssub.s32 64, 64
      %816 = vsyncadd [#allocation4], %s815
      %s818 = sshll.u32 [#allocation5], 4
      %s819 = int_to_ptr.vmem [resolvable:$true] %s818
      %821 = dma.vmem_to_hbm [thread:$0]  %s819, 64, %s12, [#allocation4]
    $region57: #{tpu_custom_call.1} parent=1 // pred_fallthru
      _
    // Predicated region
    $region58: #{tpu_custom_call.1} parent=1 // pred_check
      _
    $region59: #{tpu_custom_call.1} parent=1 // pred_check_branch
      %823 = sbr.rel (0) target = $region61
    $region60: #{tpu_custom_call.1} parent=1 // pred_region
      %s825 = ssub.s32 64, 64
      %826 = vsyncadd [#allocation7], %s825
      %s828 = sshll.u32 [#allocation6], 4
      %s829 = int_to_ptr.vmem [resolvable:$true] %s828
      %831 = dma.vmem_to_hbm [thread:$0]  %s829, 64, %s13, [#allocation7]
    $region61: #{tpu_custom_call.1} parent=1 // pred_fallthru
      _
    // Predicated region
    $region62: #{tpu_custom_call.1} parent=1 // pred_check
      _
    $region63: #{tpu_custom_call.1} parent=1 // pred_check_branch
      %833 = sbr.rel (0) target = $region65
    $region64: #{tpu_custom_call.1} parent=1 // pred_region
      %834 = dma.done [#allocation4], 64
    $region65: #{tpu_custom_call.1} parent=1 // pred_fallthru
      _
    // Predicated region
    $region66: #{tpu_custom_call.1} parent=1 // pred_check
      _
    $region67: #{tpu_custom_call.1} parent=1 // pred_check_branch
      %836 = sbr.rel (0) target = $region69
    $region68: #{tpu_custom_call.1} parent=1 // pred_region
      %837 = dma.done [#allocation7], 64
    $region69: #{tpu_custom_call.1} parent=1 // pred_fallthru
      _
    %838 = vsyncpa [#allocation3], 1
    %839 = vsyncpa [#allocation4], 1
    %840 = vsyncpa [#allocation7], 1

</llo_original>
